<compile_context>
chip_gen: v7x
topology: tpu7x:2x2x1
jax: 0.10.0
libtpu: 0.0.40
codegen_flags: <defaults>
</compile_context>

<pallas_src>
import functools

import jax
import jax.numpy as jnp
from jax.experimental import pallas as pl
from jax.experimental.pallas import tpu as pltpu


_TM_MAX = 1024          # past ~512-1024 rows the ~0.35us/step overhead is amortized
_LANE = 128
_MIB = 1024 * 1024


def _adapter_kernel(x_ref, w1_ref, b1_ref, w2_ref, b2_ref, o_ref):
    # x_ref:  (TM, D)    row tile (streamed; last grid block may be partial/padded)
    # w1_ref: (D, Bn)    fc1 weight (transposed vs torch layout), resident
    # b1_ref: (1, Bn)    fc1 bias
    # w2_ref: (Bn, D)    fc2 weight (transposed vs torch layout), resident
    # b2_ref: (1, D)     fc2 bias
    # o_ref:  (TM, D)    output tile (lane-dense D)
    x = x_ref[...]
    h = jnp.dot(x, w1_ref[...], preferred_element_type=jnp.float32) + b1_ref[...]
    h = jnp.maximum(h, 0.0)  # ReLU on the f32 accumulator
    # NOTE: for bf16 weights this downcasts h before fc2 (standard mixed precision);
    # tests use looser tolerances for that path.
    y = jnp.dot(h.astype(w2_ref.dtype), w2_ref[...],
                preferred_element_type=jnp.float32) + b2_ref[...]
    o_ref[...] = y.astype(o_ref.dtype)


def _min_sublane(dtype):
    """Minimum row-tile granularity: 8 for f32, 16 for bf16, 32 for int8/fp8."""
    itemsize = jnp.dtype(dtype).itemsize
    return max(8, 32 // max(itemsize, 1))


def _round_up(x, m):
    return ((x + m - 1) // m) * m


def _cdiv(a, b):
    return (a + b - 1) // b


def _vmem_limit_bytes():
    """Generation-aware scoped-VMEM limit (queried at trace time)."""
    try:
        cap = pltpu.get_tpu_info().vmem_capacity_bytes
    except Exception:
        cap = 64 * _MIB                 # conservative: assume v7x-sized VMEM
    if cap >= 128 * _MIB:
        return 100 * _MIB               # v5e / v6e: 128 MiB physical
    return 48 * _MIB                    # v7x: 64 MiB physical per TensorCore


def _choose_tm(m_rows, d, bn, itemsize, w_itemsize, sublane, vmem_limit):
    """Largest row tile that fits VMEM after budgeting resident weights and the
    f32 hidden scratch, then clamped so the grid has >= 2 (ideally 4) steps."""
    # Resident weight/bias buffers: single-buffered (constant index_map, Buffered(1)).
    weight_bytes = (2 * d * bn + bn + d) * w_itemsize
    # Per tile-row VMEM: 2x input + 2x output stream buffers plus the f32 hidden
    # activation h = relu(x@W1) and its cast copy fed to fc2.
    per_row = 4 * d * itemsize + 2 * bn * 4
    headroom = 4 * _MIB                 # compiler-internal scratch / layout slack
    avail = max(vmem_limit - weight_bytes - headroom, sublane * per_row)
    tm = min(_TM_MAX, max(sublane, avail // per_row))
    # Guarantee multiple grid steps so ("parallel",) shards rows across v7x's two
    # TensorCores and the software pipeline (prefetch i+1 / writeback i-1) runs.
    if m_rows > sublane:
        min_steps = 4 if m_rows >= 4 * sublane else 2
        tm = min(tm, _round_up(_cdiv(m_rows, min_steps), sublane))
    tm = min(tm, _round_up(m_rows, sublane))
    return max(sublane, (tm // sublane) * sublane)


@functools.partial(jax.jit, static_argnames=("tm",))
def visual_adapter(x, w1, b1, w2, b2, *, tm=None):
    """fc2(relu(fc1(x))). x: (..., input_dim); returns same shape/dtype as x.

    w1: (input_dim, bottleneck_dim)   (transpose of torch fc1.weight)
    b1: (bottleneck_dim,)
    w2: (bottleneck_dim, input_dim)   (transpose of torch fc2.weight)
    b2: (input_dim,)
    """
    orig_shape = x.shape
    D = orig_shape[-1]
    x2 = x.reshape(-1, D)
    M = x2.shape[0]
    Bn = w1.shape[1]

    # Zero-pad the bottleneck dim to a lane multiple: extra W1 columns / b1 entries /
    # W2 rows are zero, ReLU(0)=0, zero rows of W2 contribute nothing -> exact.
    Bn_pad = _round_up(Bn, _LANE)
    if Bn_pad != Bn:
        w1 = jnp.pad(w1, ((0, 0), (0, Bn_pad - Bn)))
        b1 = jnp.pad(b1, ((0, Bn_pad - Bn),))
        w2 = jnp.pad(w2, ((0, Bn_pad - Bn), (0, 0)))

    itemsize = jnp.dtype(x.dtype).itemsize
    w_itemsize = jnp.dtype(w1.dtype).itemsize
    sublane = _min_sublane(x.dtype)
    vmem_limit = _vmem_limit_bytes()
    if tm is None:
        tm = _choose_tm(M, D, Bn_pad, itemsize, w_itemsize, sublane, vmem_limit)

    # Ragged grid: no activation jnp.pad and no out[:M] slice (each would be an extra
    # full HBM read+write of the activation tensor, which dominates this kernel).
    grid = (_cdiv(M, tm),)

    b1_2d = b1.reshape(1, Bn_pad)
    b2_2d = b2.reshape(1, D)

    # Runtime guard: the requested tiles + resident weights + h scratch must fit the
    # scoped-VMEM limit (fail loudly here instead of a late compile failure / spills).
    est_vmem = (4 * tm * D * itemsize                       # 2x in + 2x out row tiles
                + 2 * tm * Bn_pad * 4                       # f32 h scratch (+ cast copy)
                + (2 * D * Bn_pad + Bn_pad + D) * w_itemsize)  # resident weights/biases
    assert est_vmem <= vmem_limit, (
        f"adapter tile footprint {est_vmem} B exceeds VMEM limit {vmem_limit} B "
        f"(tm={tm}, D={D}, Bn={Bn_pad}); reduce tm or the model width")

    cost = pl.CostEstimate(
        flops=4 * M * D * Bn_pad,                       # two matmuls: 2*M*D*Bn each
        transcendentals=0,
        bytes_accessed=(2 * M * D * itemsize            # x in + y out (dominant)
                        + 2 * D * Bn_pad * w_itemsize   # W1 + W2
                        + (Bn_pad + D) * w_itemsize),   # biases
    )

    resident = pl.Buffered(1)   # constant index_map -> single-buffer the weights
    out = pl.pallas_call(
        _adapter_kernel,
        out_shape=jax.ShapeDtypeStruct((M, D), x.dtype),
        grid_spec=pltpu.PrefetchScalarGridSpec(
            num_scalar_prefetch=0,
            grid=grid,
            in_specs=[
                pl.BlockSpec((tm, D), lambda i: (i, 0)),                           # x tile
                pl.BlockSpec((D, Bn_pad), lambda i: (0, 0), pipeline_mode=resident),  # W1
                pl.BlockSpec((1, Bn_pad), lambda i: (0, 0), pipeline_mode=resident),  # b1
                pl.BlockSpec((Bn_pad, D), lambda i: (0, 0), pipeline_mode=resident),  # W2
                pl.BlockSpec((1, D), lambda i: (0, 0), pipeline_mode=resident),       # b2
            ],
            out_specs=pl.BlockSpec((tm, D), lambda i: (i, 0)),
        ),
        compiler_params=pltpu.CompilerParams(
            dimension_semantics=("parallel",),      # row axis shards across v7x's 2 TCs
            vmem_limit_bytes=vmem_limit,
        ),
        cost_estimate=cost,
    )(x2, w1, b1_2d, w2, b2_2d)

    return out.reshape(orig_shape)


def init_params(key, input_dim, bottleneck_dim, dtype=jnp.float32):
    """Deterministic synthetic init matching nn.Linear shapes.

    torch stores Linear weights as (out, in); we store the transpose (in, out)
    so the kernel can do x @ W directly.
    """
    k1, k2, k3, k4 = jax.random.split(key, 4)
    s1 = 1.0 / (input_dim ** 0.5)
    s2 = 1.0 / (bottleneck_dim ** 0.5)
    w1 = jax.random.uniform(k1, (input_dim, bottleneck_dim), dtype, -s1, s1)
    b1 = jax.random.uniform(k2, (bottleneck_dim,), dtype, -s1, s1)
    w2 = jax.random.uniform(k3, (bottleneck_dim, input_dim), dtype, -s2, s2)
    b2 = jax.random.uniform(k4, (input_dim,), dtype, -s2, s2)
    return w1, b1, w2, b2


def _reference(x, w1, b1, w2, b2):
    return jnp.maximum(x @ w1 + b1, 0.0) @ w2 + b2


if __name__ == "__main__":
    input_dim = 128       # lane-aligned feature dim
    bottleneck_dim = 32   # deliberately not a lane multiple: exercises Bn padding
    batch, seq = 2, 8     # -> 16 rows

    key = jax.random.PRNGKey(0)
    kx, kp, kx2 = jax.random.split(key, 3)
    x = jax.random.normal(kx, (batch, seq, input_dim), jnp.float32)
    w1, b1, w2, b2 = init_params(kp, input_dim, bottleneck_dim)

    y = visual_adapter(x, w1, b1, w2, b2)
    jax.block_until_ready(y)
    ref = _reference(x, w1, b1, w2, b2)
    assert y.shape == x.shape and y.dtype == x.dtype
    assert jnp.allclose(y, ref, atol=1e-5, rtol=1e-5), "mismatch vs reference"

    # Ragged row count (M=15, not a tile multiple): exercises the partial-block path
    # (padded reads, masked OOB writes) with no extra pad/slice HBM passes.
    x_odd = jax.random.normal(kx2, (3, 5, input_dim), jnp.float32)
    y_odd = visual_adapter(x_odd, w1, b1, w2, b2)
    jax.block_until_ready(y_odd)
    ref_odd = _reference(x_odd, w1, b1, w2, b2)
    assert y_odd.shape == x_odd.shape
    assert jnp.allclose(y_odd, ref_odd, atol=1e-5, rtol=1e-5), "ragged mismatch"

    # bf16 activation/weight stream (the memory-bound win on v6e/v7x). Looser
    # tolerance: h is downcast to bf16 between the two dots.
    xb = x.astype(jnp.bfloat16)
    wb = tuple(p.astype(jnp.bfloat16) for p in (w1, b1, w2, b2))
    yb = visual_adapter(xb, *wb)
    jax.block_until_ready(yb)
    assert yb.shape == x.shape and yb.dtype == jnp.bfloat16
    assert jnp.allclose(yb.astype(jnp.float32), ref, atol=1e-1, rtol=1e-1), "bf16 mismatch"

    print("KERNEL_OK")
</pallas_src>

<mosaic_0001>
module attributes {stable_mosaic.version = 11 : i64} {
  func.func @_adapter_kernel(%arg0: i32, %arg1: memref<8x128xf32, #tpu.memory_space<vmem>>, %arg2: memref<128x128xf32, #tpu.memory_space<vmem>>, %arg3: memref<1x128xf32, #tpu.memory_space<vmem>>, %arg4: memref<128x128xf32, #tpu.memory_space<vmem>>, %arg5: memref<1x128xf32, #tpu.memory_space<vmem>>, %arg6: memref<8x128xf32, #tpu.memory_space<vmem>>) attributes {dimension_semantics = [#tpu.dimension_semantics<parallel>], iteration_bounds = array<i64: 2>, scalar_prefetch = 0 : i64, scratch_operands = 0 : i64, tpu.core_type = #tpu.core_type<tc>, window_params = [{transform_indices = @transform_0, window_bounds = array<i64: 8, 128>}, {pipeline_mode = #tpu.pipeline_mode<synchronous>, transform_indices = @transform_1, window_bounds = array<i64: 128, 128>}, {pipeline_mode = #tpu.pipeline_mode<synchronous>, transform_indices = @transform_2, window_bounds = array<i64: 1, 128>}, {pipeline_mode = #tpu.pipeline_mode<synchronous>, transform_indices = @transform_3, window_bounds = array<i64: 128, 128>}, {pipeline_mode = #tpu.pipeline_mode<synchronous>, transform_indices = @transform_4, window_bounds = array<i64: 1, 128>}, {transform_indices = @transform_5, window_bounds = array<i64: 8, 128>}]} {
    %c0 = arith.constant 0 : index
    %c0_0 = arith.constant 0 : index
    %0 = vector.load %arg1[%c0, %c0_0] : memref<8x128xf32, #tpu.memory_space<vmem>>, vector<8x128xf32>
    %c0_1 = arith.constant 0 : index
    %c0_2 = arith.constant 0 : index
    %1 = vector.load %arg2[%c0_1, %c0_2] : memref<128x128xf32, #tpu.memory_space<vmem>>, vector<128x128xf32>
    %cst = arith.constant dense<0.000000e+00> : vector<8x128xf32>
    %2 = tpu.matmul %0, %1, %cst {dimension_numbers = #tpu.dot_dimension_numbers<[1], [0], [0], [1], [0, 0, 1, 1], [], []>} : vector<8x128xf32>, vector<128x128xf32>, vector<8x128xf32> -> vector<8x128xf32>
    %c0_3 = arith.constant 0 : index
    %c0_4 = arith.constant 0 : index
    %3 = vector.load %arg3[%c0_3, %c0_4] : memref<1x128xf32, #tpu.memory_space<vmem>>, vector<1x128xf32>
    %4 = vector.broadcast %3 : vector<1x128xf32> to vector<8x128xf32>
    %5 = arith.addf %2, %4 : vector<8x128xf32>
    %cst_5 = arith.constant 0.000000e+00 : f32
    %6 = vector.broadcast %cst_5 : f32 to vector<8x128xf32>
    %7 = arith.maximumf %5, %6 : vector<8x128xf32>
    %c0_6 = arith.constant 0 : index
    %c0_7 = arith.constant 0 : index
    %8 = vector.load %arg4[%c0_6, %c0_7] : memref<128x128xf32, #tpu.memory_space<vmem>>, vector<128x128xf32>
    %cst_8 = arith.constant dense<0.000000e+00> : vector<8x128xf32>
    %9 = tpu.matmul %7, %8, %cst_8 {dimension_numbers = #tpu.dot_dimension_numbers<[1], [0], [0], [1], [0, 0, 1, 1], [], []>} : vector<8x128xf32>, vector<128x128xf32>, vector<8x128xf32> -> vector<8x128xf32>
    %c0_9 = arith.constant 0 : index
    %c0_10 = arith.constant 0 : index
    %10 = vector.load %arg5[%c0_9, %c0_10] : memref<1x128xf32, #tpu.memory_space<vmem>>, vector<1x128xf32>
    %11 = vector.broadcast %10 : vector<1x128xf32> to vector<8x128xf32>
    %12 = arith.addf %9, %11 : vector<8x128xf32>
    %c0_11 = arith.constant 0 : index
    %c0_12 = arith.constant 0 : index
    %13 = vector.load %arg6[%c0_11, %c0_12] : memref<8x128xf32, #tpu.memory_space<vmem>>, vector<8x128xf32>
    tpu.vector_store %arg6[%c0_11, %c0_12], %12 {strides = array<i32>} : memref<8x128xf32, #tpu.memory_space<vmem>>, vector<8x128xf32>,
    return
  }
  func.func @transform_0(%arg0: i32) -> (i32, i32) {
    %c0_i32 = arith.constant 0 : i32
    %c0_i32_0 = arith.constant 0 : i32
    return %arg0, %c0_i32 : i32, i32
  }
  func.func @transform_1(%arg0: i32) -> (i32, i32) {
    %c0_i32 = arith.constant 0 : i32
    %c0_i32_0 = arith.constant 0 : i32
    %c0_i32_1 = arith.constant 0 : i32
    return %c0_i32, %c0_i32_0 : i32, i32
  }
  func.func @transform_2(%arg0: i32) -> (i32, i32) {
    %c0_i32 = arith.constant 0 : i32
    %c0_i32_0 = arith.constant 0 : i32
    %c0_i32_1 = arith.constant 0 : i32
    return %c0_i32, %c0_i32_0 : i32, i32
  }
  func.func @transform_3(%arg0: i32) -> (i32, i32) {
    %c0_i32 = arith.constant 0 : i32
    %c0_i32_0 = arith.constant 0 : i32
    %c0_i32_1 = arith.constant 0 : i32
    return %c0_i32, %c0_i32_0 : i32, i32
  }
  func.func @transform_4(%arg0: i32) -> (i32, i32) {
    %c0_i32 = arith.constant 0 : i32
    %c0_i32_0 = arith.constant 0 : i32
    %c0_i32_1 = arith.constant 0 : i32
    return %c0_i32, %c0_i32_0 : i32, i32
  }
  func.func @transform_5(%arg0: i32) -> (i32, i32) {
    %c0_i32 = arith.constant 0 : i32
    %c0_i32_0 = arith.constant 0 : i32
    return %arg0, %c0_i32 : i32, i32
  }
}

</mosaic_0001>

<llo_original>
// kernel: visual_adapter.1
$region0: #{visual_adapter.1}
  #allocation0 [shape = 'u32[]', space=smem, size = 0x4, offset = 0x4, fixed_abs, tag = 'smem constant byte address 0x4 - core index']
  #allocation1 [shape = 'u32[144,128]{1,0:T(1,128)}', space=vmem, size = 0x12000, scoped, tag = 'internal scratch']
  %s0 = inlined_call_operand.vmem [shape: f32[16,128], index: 0, kind: input, shape index: {}]
  %s1 = inlined_call_operand.vmem [shape: f32[128,128], index: 1, kind: input, shape index: {}]
  %s2 = inlined_call_operand.vmem [shape: f32[1,128], index: 2, kind: input, shape index: {}]
  %s3 = inlined_call_operand.vmem [shape: f32[128,128], index: 3, kind: input, shape index: {}]
  %s4 = inlined_call_operand.vmem [shape: f32[1,128], index: 4, kind: input, shape index: {}]
  %s5 = inlined_call_operand.hbm [shape: f32[16,128], index: 5, kind: output, shape index: {}]
  %s6 = sld [smem:[#allocation0]]
  $region53: #{visual_adapter.1} parent=0
    _
  %s8 = ssub.s32 1, %s6
  %s9 = scalar_select 0, %s8, %s6
  $region1: #{visual_adapter.1} parent=0
    #allocation2 [shape = 'u8[8192]{0}', space=vmem, size = 0x2000, scoped, tag = 'output window, operand 0']
    #allocation3 [shape = 's32[2]{0}', space=sflag, size = 0x8, scoped, tag = 'scoped memory for visual_adapter.1']
    %10 = vsyncpa [#allocation3], 0
    %s11 = scalar_lea.sflag [#allocation3], 1
    %12 = vsyncpa %s11, 0
    loop: start=0, step=1, limit=4
    $region2: #{visual_adapter.1} parent=1 // loop_pre_header
      _
    $region3: #{visual_adapter.1} parent=1 // loop_header
      %s14 = sphi 0, %s18
      %p15 = scmp.ge.s32.totalorder %s14, 4
      %s24 = sphi 0, %s26
      %s27 = sphi 0, %s24
      %s28 = sphi 0, %s27
      %s44 = sphi 0, %s28
      %s48 = sphi 0, %s48
      %s50 = sphi 0, %s48
      %s51 = sphi 0, %s50
      %s65 = sphi 0, %s51
      %s69 = sphi 0, %s69
      %s71 = sphi 0, %s69
      %s72 = sphi 0, %s71
      %s86 = sphi 0, %s72
      %s90 = sphi 0, %s90
      %s92 = sphi 0, %s90
      %s93 = sphi 0, %s92
      %s107 = sphi 0, %s93
      %s111 = sphi 0, %s111
      %s113 = sphi 0, %s111
      %s114 = sphi 0, %s113
      %s128 = sphi 0, %s114
      %s134 = sphi 0, %s136
      %s137 = sphi 0, %s134
      %s138 = sphi 0, %s137
      %s154 = sphi 0, %s138
    $region4: #{visual_adapter.1} parent=1 // loop_header_branch
      %17 = sbr.rel (%p15) target = $region8
    $region5: #{visual_adapter.1} parent=1 // loop_body
      %s19 = ssub.s32 %s14, 1
      %s20 = ssub.s32 %s14, 2
      %s21 = sadd.s32 %s14, 1
      %s22 = ssub.s32 %s14, %s21
      %p23 = scmp.eq.s32.totalorder %s22, 0
      %s25 = sadd.s32 %s24, 1
      %s26 = scalar_select %p23, %s24, %s25
      %p29 = pneg %p23
      %p30 = scmp.eq.s32.totalorder %s14, 1
      %p31 = por %p29, %p30
      %p32 = scmp.ne.s32.totalorder %s24, %s27
      %p33 = scmp.eq.s32.totalorder %s14, 0
      %p34 = por %p32, %p33
      %p35 = scmp.ne.s32.totalorder %s24, %s27
      %p36 = scmp.eq.s32.totalorder %s19, 1
      %p37 = por %p35, %p36
      %p38 = scmp.ne.s32.totalorder %s27, %s28
      %p39 = scmp.eq.s32.totalorder %s19, 0
      %p40 = por %p38, %p39
      %p41 = scmp.ne.s32.totalorder %s27, %s28
      %p42 = scmp.eq.s32.totalorder %s20, 1
      %p43 = por %p41, %p42
      %p45 = scmp.ne.s32.totalorder %s28, %s44
      %p46 = scmp.eq.s32.totalorder %s20, 0
      %p47 = por %p45, %p46
      %s49 = sadd.s32 %s48, 1
      %p52 = scmp.eq.s32.totalorder %s14, 1
      %p53 = scmp.ne.s32.totalorder %s48, %s50
      %p54 = scmp.eq.s32.totalorder %s14, 0
      %p55 = por %p53, %p54
      %p56 = scmp.ne.s32.totalorder %s48, %s50
      %p57 = scmp.eq.s32.totalorder %s19, 1
      %p58 = por %p56, %p57
      %p59 = scmp.ne.s32.totalorder %s50, %s51
      %p60 = scmp.eq.s32.totalorder %s19, 0
      %p61 = por %p59, %p60
      %p62 = scmp.ne.s32.totalorder %s50, %s51
      %p63 = scmp.eq.s32.totalorder %s20, 1
      %p64 = por %p62, %p63
      %p66 = scmp.ne.s32.totalorder %s51, %s65
      %p67 = scmp.eq.s32.totalorder %s20, 0
      %p68 = por %p66, %p67
      %s70 = sadd.s32 %s69, 1
      %p73 = scmp.eq.s32.totalorder %s14, 1
      %p74 = scmp.ne.s32.totalorder %s69, %s71
      %p75 = scmp.eq.s32.totalorder %s14, 0
      %p76 = por %p74, %p75
      %p77 = scmp.ne.s32.totalorder %s69, %s71
      %p78 = scmp.eq.s32.totalorder %s19, 1
      %p79 = por %p77, %p78
      %p80 = scmp.ne.s32.totalorder %s71, %s72
      %p81 = scmp.eq.s32.totalorder %s19, 0
      %p82 = por %p80, %p81
      %p83 = scmp.ne.s32.totalorder %s71, %s72
      %p84 = scmp.eq.s32.totalorder %s20, 1
      %p85 = por %p83, %p84
      %p87 = scmp.ne.s32.totalorder %s72, %s86
      %p88 = scmp.eq.s32.totalorder %s20, 0
      %p89 = por %p87, %p88
      %s91 = sadd.s32 %s90, 1
      %p94 = scmp.eq.s32.totalorder %s14, 1
      %p95 = scmp.ne.s32.totalorder %s90, %s92
      %p96 = scmp.eq.s32.totalorder %s14, 0
      %p97 = por %p95, %p96
      %p98 = scmp.ne.s32.totalorder %s90, %s92
      %p99 = scmp.eq.s32.totalorder %s19, 1
      %p100 = por %p98, %p99
      %p101 = scmp.ne.s32.totalorder %s92, %s93
      %p102 = scmp.eq.s32.totalorder %s19, 0
      %p103 = por %p101, %p102
      %p104 = scmp.ne.s32.totalorder %s92, %s93
      %p105 = scmp.eq.s32.totalorder %s20, 1
      %p106 = por %p104, %p105
      %p108 = scmp.ne.s32.totalorder %s93, %s107
      %p109 = scmp.eq.s32.totalorder %s20, 0
      %p110 = por %p108, %p109
      %s112 = sadd.s32 %s111, 1
      %p115 = scmp.eq.s32.totalorder %s14, 1
      %p116 = scmp.ne.s32.totalorder %s111, %s113
      %p117 = scmp.eq.s32.totalorder %s14, 0
      %p118 = por %p116, %p117
      %p119 = scmp.ne.s32.totalorder %s111, %s113
      %p120 = scmp.eq.s32.totalorder %s19, 1
      %p121 = por %p119, %p120
      %p122 = scmp.ne.s32.totalorder %s113, %s114
      %p123 = scmp.eq.s32.totalorder %s19, 0
      %p124 = por %p122, %p123
      %p125 = scmp.ne.s32.totalorder %s113, %s114
      %p126 = scmp.eq.s32.totalorder %s20, 1
      %p127 = por %p125, %p126
      %p129 = scmp.ne.s32.totalorder %s114, %s128
      %p130 = scmp.eq.s32.totalorder %s20, 0
      %p131 = por %p129, %p130
      %s132 = ssub.s32 %s14, %s21
      %p133 = scmp.eq.s32.totalorder %s132, 0
      %s135 = sadd.s32 %s134, 1
      %s136 = scalar_select %p133, %s134, %s135
      %p139 = pneg %p133
      %p140 = scmp.eq.s32.totalorder %s14, 1
      %p141 = por %p139, %p140
      %p142 = scmp.ne.s32.totalorder %s134, %s137
      %p143 = scmp.eq.s32.totalorder %s14, 0
      %p144 = por %p142, %p143
      %p145 = scmp.ne.s32.totalorder %s134, %s137
      %p146 = scmp.eq.s32.totalorder %s19, 1
      %p147 = por %p145, %p146
      %p148 = scmp.ne.s32.totalorder %s137, %s138
      %p149 = scmp.eq.s32.totalorder %s19, 0
      %p150 = por %p148, %p149
      %p151 = scmp.ne.s32.totalorder %s137, %s138
      %p152 = scmp.eq.s32.totalorder %s20, 1
      %p153 = por %p151, %p152
      %p155 = scmp.ne.s32.totalorder %s138, %s154
      %p156 = scmp.eq.s32.totalorder %s20, 0
      %p157 = por %p155, %p156
      %p158 = scmp.le.s32.totalorder 1, %s14
      %p159 = scmp.lt.s32.totalorder %s14, 3
      %p160 = pnand %p158, %p159
      %p161 = pneg %p160
      // Predicated region
      $region9: #{visual_adapter.1} parent=5 // pred_check
        _
      $region10: #{visual_adapter.1} parent=5 // pred_check_branch
        %163 = sbr.rel (%p160) target = $region12
      $region11: #{visual_adapter.1} parent=5 // pred_region
        %s164 = ssub.s32 %s14, 1
        // Predicated region
        $region13: #{visual_adapter.1} parent=11 // pred_check
          %p165 = pneg %p61
        $region14: #{visual_adapter.1} parent=11 // pred_check_branch
          %167 = sbr.rel (%p165) target = $region16
        $region15: #{visual_adapter.1} parent=11 // pred_region
          _
        $region16: #{visual_adapter.1} parent=11 // pred_fallthru
          _
        // Predicated region
        $region17: #{visual_adapter.1} parent=11 // pred_check
          %p168 = pneg %p82
        $region18: #{visual_adapter.1} parent=11 // pred_check_branch
          %170 = sbr.rel (%p168) target = $region20
        $region19: #{visual_adapter.1} parent=11 // pred_region
          _
        $region20: #{visual_adapter.1} parent=11 // pred_fallthru
          _
        // Predicated region
        $region21: #{visual_adapter.1} parent=11 // pred_check
          %p171 = pneg %p103
        $region22: #{visual_adapter.1} parent=11 // pred_check_branch
          %173 = sbr.rel (%p171) target = $region24
        $region23: #{visual_adapter.1} parent=11 // pred_region
          _
        $region24: #{visual_adapter.1} parent=11 // pred_fallthru
          _
        // Predicated region
        $region25: #{visual_adapter.1} parent=11 // pred_check
          %p174 = pneg %p124
        $region26: #{visual_adapter.1} parent=11 // pred_check_branch
          %176 = sbr.rel (%p174) target = $region28
        $region27: #{visual_adapter.1} parent=11 // pred_region
          _
        $region28: #{visual_adapter.1} parent=11 // pred_fallthru
          _
      $region12: #{visual_adapter.1} parent=5 // pred_fallthru
        _
      %p177 = scmp.lt.s32.totalorder %s14, 2
      // Predicated region
      $region29: #{visual_adapter.1} parent=5 // pred_check
        %p178 = pneg %p177
      $region30: #{visual_adapter.1} parent=5 // pred_check_branch
        %180 = sbr.rel (%p178) target = $region32
      $region31: #{visual_adapter.1} parent=5 // pred_region
        // Predicated region
        $region33: #{visual_adapter.1} parent=31 // pred_check
          %p181 = pneg %p34
        $region34: #{visual_adapter.1} parent=31 // pred_check_branch
          %183 = sbr.rel (%p181) target = $region36
        $region35: #{visual_adapter.1} parent=31 // pred_region
          %p184 = scmp.lt.s32.totalorder %s14, 1
          %s185 = scalar_select %p184, %s14, 1
          %s186 = smul.addr %s185, 8
          %s187 = scalar_lea.vmem %s0, %s186
        $region36: #{visual_adapter.1} parent=31 // pred_fallthru
          _
      $region32: #{visual_adapter.1} parent=5 // pred_fallthru
        _
      %p188 = scmp.le.s32.totalorder 1, %s14
      %p189 = scmp.lt.s32.totalorder %s14, 3
      %p190 = pnand %p188, %p189
      %p191 = pneg %p190
      // Predicated region
      $region37: #{visual_adapter.1} parent=5 // pred_check
        _
      $region38: #{visual_adapter.1} parent=5 // pred_check_branch
        %193 = sbr.rel (%p190) target = $region40
      $region39: #{visual_adapter.1} parent=5 // pred_region
        %s194 = ssub.s32 %s14, 1
        %p195 = scmp.lt.s32.totalorder %s19, 1
        %s196 = scalar_select %p195, %s19, 1
        %s197 = smul.addr %s196, 8
        %s198 = scalar_lea.vmem %s0, %s197
        %p199 = pneg %p40
        %p200 = pneg %p37
        %p201 = pneg %p61
        %p202 = pneg %p58
        %p203 = pneg %p82
        %p204 = pneg %p79
        %p205 = pneg %p103
        %p206 = pneg %p100
        %p207 = pneg %p124
        %p208 = pneg %p121
        %p209 = pneg %p150
        %p210 = pneg %p147
        %s211 = sand.u32 %s137, 1
        %s212 = scalar_lea.sflag [#allocation3], %s211
        %s213 = sand.u32 %s137, 1
        %s214 = smul.addr %s213, 8
        %s215 = scalar_lea.vmem [#allocation2], %s214
        %p216 = scmp.lt.s32.totalorder %s19, 1
        %s217 = scalar_select %p216, %s19, 1
        %s218 = smul.addr %s217, 8
        %s219 = scalar_lea.vmem %s0, %s218
        %v220 = vld [vmem:[%s219] sm:$0xff]
        %v221 = vld [vmem:[%s1] sm:$0xff]
        %v222 = vld [vmem:[%s1 + $0x8] sm:$0xff]
        %v223 = vld [vmem:[%s1 + $0x10] sm:$0xff]
        %v224 = vld [vmem:[%s1 + $0x18] sm:$0xff]
        %v225 = vld [vmem:[%s1 + $0x20] sm:$0xff]
        %v226 = vld [vmem:[%s1 + $0x28] sm:$0xff]
        %v227 = vld [vmem:[%s1 + $0x30] sm:$0xff]
        %v228 = vld [vmem:[%s1 + $0x38] sm:$0xff]
        %v229 = vld [vmem:[%s1 + $0x40] sm:$0xff]
        %v230 = vld [vmem:[%s1 + $0x48] sm:$0xff]
        %v231 = vld [vmem:[%s1 + $0x50] sm:$0xff]
        %v232 = vld [vmem:[%s1 + $0x58] sm:$0xff]
        %v233 = vld [vmem:[%s1 + $0x60] sm:$0xff]
        %v234 = vld [vmem:[%s1 + $0x68] sm:$0xff]
        %v235 = vld [vmem:[%s1 + $0x70] sm:$0xff]
        %v236 = vld [vmem:[%s1 + $0x78] sm:$0xff]
        %v237 = vld [vmem:[%s2] sm:$0x1]
        %v239 = vlaneseq
        %v240 = vshrl.u32 %v239, 7
        %v241 = vsub.s32 0, %v240
        %v242 = vrot.slane %v237, %v241
        %244 = vmatprep.subr.mxu0 0.0
        %245 = vmatpush1.msra.mxu0 %v221
        %246 = vmatprep.subr.mxu0 0.0
        %247 = vmatpush1.msra.mxu0 %v222
        %248 = vmatprep.subr.mxu0 0.0
        %249 = vmatpush1.msra.mxu0 %v223
        %250 = vmatprep.subr.mxu0 0.0
        %251 = vmatpush1.msra.mxu0 %v224
        %252 = vmatprep.subr.mxu0 0.0
        %253 = vmatpush1.msra.mxu0 %v225
        %254 = vmatprep.subr.mxu0 0.0
        %255 = vmatpush1.msra.mxu0 %v226
        %256 = vmatprep.subr.mxu0 0.0
        %257 = vmatpush1.msra.mxu0 %v227
        %258 = vmatprep.subr.mxu0 0.0
        %259 = vmatpush1.msra.mxu0 %v228
        %260 = vmatprep.subr.mxu0 0.0
        %261 = vmatpush1.msra.mxu0 %v229
        %262 = vmatprep.subr.mxu0 0.0
        %263 = vmatpush1.msra.mxu0 %v230
        %264 = vmatprep.subr.mxu0 0.0
        %265 = vmatpush1.msra.mxu0 %v231
        %266 = vmatprep.subr.mxu0 0.0
        %267 = vmatpush1.msra.mxu0 %v232
        %268 = vmatprep.subr.mxu0 0.0
        %269 = vmatpush1.msra.mxu0 %v233
        %270 = vmatprep.subr.mxu0 0.0
        %271 = vmatpush1.msra.mxu0 %v234
        %272 = vmatprep.subr.mxu0 0.0
        %273 = vmatpush1.msra.mxu0 %v235
        %274 = vmatprep.subr.mxu0 0.0
        %275 = vmatpush1.msra.mxu0 %v236
        %276 = vmatprep.subr.mxu0 0.0
        %277 = vmatpush1.msra.mxu0 0.0
        %278 = vmatprep.subr.mxu0 0.0
        %279 = vmatpush1.msra.mxu0 0.0
        %280 = vmatprep.subr.mxu0 0.0
        %281 = vmatpush1.msra.mxu0 0.0
        %282 = vmatprep.subr.mxu0 0.0
        %283 = vmatpush1.msra.mxu0 0.0
        %284 = vmatprep.subr.mxu0 0.0
        %285 = vmatpush1.msra.mxu0 0.0
        %286 = vmatprep.subr.mxu0 0.0
        %287 = vmatpush1.msra.mxu0 0.0
        %288 = vmatprep.subr.mxu0 0.0
        %289 = vmatpush1.msra.mxu0 0.0
        %290 = vmatprep.subr.mxu0 0.0
        %291 = vmatpush1.msra.mxu0 0.0
        %292 = vmatprep.subr.mxu0 0.0
        %293 = vmatpush1.msra.mxu0 0.0
        %294 = vmatprep.subr.mxu0 0.0
        %295 = vmatpush1.msra.mxu0 0.0
        %296 = vmatprep.subr.mxu0 0.0
        %297 = vmatpush1.msra.mxu0 0.0
        %298 = vmatprep.subr.mxu0 0.0
        %299 = vmatpush1.msra.mxu0 0.0
        %300 = vmatprep.subr.mxu0 0.0
        %301 = vmatpush1.msra.mxu0 0.0
        %302 = vmatprep.subr.mxu0 0.0
        %303 = vmatpush1.msra.mxu0 0.0
        %304 = vmatprep.subr.mxu0 0.0
        %305 = vmatpush1.msra.mxu0 0.0
        %306 = vmatprep.subr.mxu0 0.0
        %307 = vmatpush1.msra.mxu0 0.0
        %308 = vmatprep.mubr.f32.mxu0 0.0
        %309 = vmatmul.mubr.f32.gmra.mrb[0].mxu0 %v220
        %v310 = vpop.f32.mrb[0].mxu0
        %v311 = vadd.f32 %v242, %v310
        %v312 = vpop.f32.mrb[0].mxu0
        %313 = vdwg.mxu0
        %v314 = vmax.f32 %v311, 0.0
        %v315 = vld [vmem:[%s3] sm:$0xff]
        %v316 = vld [vmem:[%s3 + $0x8] sm:$0xff]
        %v317 = vld [vmem:[%s3 + $0x10] sm:$0xff]
        %v318 = vld [vmem:[%s3 + $0x18] sm:$0xff]
        %v319 = vld [vmem:[%s3 + $0x20] sm:$0xff]
        %v320 = vld [vmem:[%s3 + $0x28] sm:$0xff]
        %v321 = vld [vmem:[%s3 + $0x30] sm:$0xff]
        %v322 = vld [vmem:[%s3 + $0x38] sm:$0xff]
        %v323 = vld [vmem:[%s3 + $0x40] sm:$0xff]
        %v324 = vld [vmem:[%s3 + $0x48] sm:$0xff]
        %v325 = vld [vmem:[%s3 + $0x50] sm:$0xff]
        %v326 = vld [vmem:[%s3 + $0x58] sm:$0xff]
        %v327 = vld [vmem:[%s3 + $0x60] sm:$0xff]
        %v328 = vld [vmem:[%s3 + $0x68] sm:$0xff]
        %v329 = vld [vmem:[%s3 + $0x70] sm:$0xff]
        %v330 = vld [vmem:[%s3 + $0x78] sm:$0xff]
        %v331 = vld [vmem:[%s4] sm:$0x1]
        %v333 = vlaneseq
        %v334 = vshrl.u32 %v333, 7
        %v335 = vsub.s32 0, %v334
        %v336 = vrot.slane %v331, %v335
        %338 = vmatprep.subr.mxu0 0.0
        %339 = vmatpush1.msra.mxu0 %v315
        %340 = vmatprep.subr.mxu0 0.0
        %341 = vmatpush1.msra.mxu0 %v316
        %342 = vmatprep.subr.mxu0 0.0
        %343 = vmatpush1.msra.mxu0 %v317
        %344 = vmatprep.subr.mxu0 0.0
        %345 = vmatpush1.msra.mxu0 %v318
        %346 = vmatprep.subr.mxu0 0.0
        %347 = vmatpush1.msra.mxu0 %v319
        %348 = vmatprep.subr.mxu0 0.0
        %349 = vmatpush1.msra.mxu0 %v320
        %350 = vmatprep.subr.mxu0 0.0
        %351 = vmatpush1.msra.mxu0 %v321
        %352 = vmatprep.subr.mxu0 0.0
        %353 = vmatpush1.msra.mxu0 %v322
        %354 = vmatprep.subr.mxu0 0.0
        %355 = vmatpush1.msra.mxu0 %v323
        %356 = vmatprep.subr.mxu0 0.0
        %357 = vmatpush1.msra.mxu0 %v324
        %358 = vmatprep.subr.mxu0 0.0
        %359 = vmatpush1.msra.mxu0 %v325
        %360 = vmatprep.subr.mxu0 0.0
        %361 = vmatpush1.msra.mxu0 %v326
        %362 = vmatprep.subr.mxu0 0.0
        %363 = vmatpush1.msra.mxu0 %v327
        %364 = vmatprep.subr.mxu0 0.0
        %365 = vmatpush1.msra.mxu0 %v328
        %366 = vmatprep.subr.mxu0 0.0
        %367 = vmatpush1.msra.mxu0 %v329
        %368 = vmatprep.subr.mxu0 0.0
        %369 = vmatpush1.msra.mxu0 %v330
        %370 = vmatprep.subr.mxu0 0.0
        %371 = vmatpush1.msra.mxu0 0.0
        %372 = vmatprep.subr.mxu0 0.0
        %373 = vmatpush1.msra.mxu0 0.0
        %374 = vmatprep.subr.mxu0 0.0
        %375 = vmatpush1.msra.mxu0 0.0
        %376 = vmatprep.subr.mxu0 0.0
        %377 = vmatpush1.msra.mxu0 0.0
        %378 = vmatprep.subr.mxu0 0.0
        %379 = vmatpush1.msra.mxu0 0.0
        %380 = vmatprep.subr.mxu0 0.0
        %381 = vmatpush1.msra.mxu0 0.0
        %382 = vmatprep.subr.mxu0 0.0
        %383 = vmatpush1.msra.mxu0 0.0
        %384 = vmatprep.subr.mxu0 0.0
        %385 = vmatpush1.msra.mxu0 0.0
        %386 = vmatprep.subr.mxu0 0.0
        %387 = vmatpush1.msra.mxu0 0.0
        %388 = vmatprep.subr.mxu0 0.0
        %389 = vmatpush1.msra.mxu0 0.0
        %390 = vmatprep.subr.mxu0 0.0
        %391 = vmatpush1.msra.mxu0 0.0
        %392 = vmatprep.subr.mxu0 0.0
        %393 = vmatpush1.msra.mxu0 0.0
        %394 = vmatprep.subr.mxu0 0.0
        %395 = vmatpush1.msra.mxu0 0.0
        %396 = vmatprep.subr.mxu0 0.0
        %397 = vmatpush1.msra.mxu0 0.0
        %398 = vmatprep.subr.mxu0 0.0
        %399 = vmatpush1.msra.mxu0 0.0
        %400 = vmatprep.subr.mxu0 0.0
        %401 = vmatpush1.msra.mxu0 0.0
        %402 = vmatprep.mubr.f32.mxu0 0.0
        %403 = vmatmul.mubr.f32.gmra.mrb[0].mxu0 %v314
        %v404 = vpop.f32.mrb[0].mxu0
        %v405 = vadd.f32 %v336, %v404
        %v406 = vpop.f32.mrb[0].mxu0
        %407 = vdwg.mxu0
        %408 = vst [vmem:[%s215] sm:$0xff] %v405
        %s409 = sand.u32 %s137, 1
        %s410 = scalar_lea.sflag [#allocation3], %s409
        %s411 = sand.u32 %s137, 1
        %s412 = smul.addr %s411, 8
        %s413 = scalar_lea.vmem [#allocation2], %s412
        // Predicated region
        $region41: #{visual_adapter.1} parent=39 // pred_check
          %p414 = pneg %p147
        $region42: #{visual_adapter.1} parent=39 // pred_check_branch
          %416 = sbr.rel (%p414) target = $region44
        $region43: #{visual_adapter.1} parent=39 // pred_region
          %s418 = ssub.s32 128, 128
          %419 = vsyncadd %s410, %s418
          %s420 = smul.addr %s19, 128
          %s421 = scalar_lea.hbm %s5, %s420
          %s423 = sshll.u32 %s413, 4
          %s424 = int_to_ptr.vmem [resolvable:$true] %s423
          %426 = dma.vmem_to_hbm [thread:$0]  %s424, 128, %s421, %s410
        $region44: #{visual_adapter.1} parent=39 // pred_fallthru
          _
      $region40: #{visual_adapter.1} parent=5 // pred_fallthru
        _
      %p427 = scmp.le.s32.totalorder 2, %s14
      // Predicated region
      $region45: #{visual_adapter.1} parent=5 // pred_check
        %p428 = pneg %p427
      $region46: #{visual_adapter.1} parent=5 // pred_check_branch
        %430 = sbr.rel (%p428) target = $region48
      $region47: #{visual_adapter.1} parent=5 // pred_region
        %s431 = ssub.s32 %s14, 2
        // Predicated region
        $region49: #{visual_adapter.1} parent=47 // pred_check
          %p432 = pneg %p153
        $region50: #{visual_adapter.1} parent=47 // pred_check_branch
          %434 = sbr.rel (%p432) target = $region52
        $region51: #{visual_adapter.1} parent=47 // pred_region
          %s435 = sand.u32 %s138, 1
          %s436 = scalar_lea.sflag [#allocation3], %s435
          %s437 = sand.u32 %s138, 1
          %s438 = smul.addr %s437, 8
          %s439 = scalar_lea.vmem [#allocation2], %s438
          %440 = dma.done %s436, 128
        $region52: #{visual_adapter.1} parent=47 // pred_fallthru
          _
      $region48: #{visual_adapter.1} parent=5 // pred_fallthru
        _
    $region6: #{visual_adapter.1} parent=1 // loop_footer
      %s18 = sadd.s32 1, %s14
    $region7: #{visual_adapter.1} parent=1 // loop_footer_branch
      %13 = sbr.rel target = $region3
    $region8: #{visual_adapter.1} parent=1 // loop_exit
      _
    %441 = vsyncpa [#allocation3], 1
    %s442 = scalar_lea.sflag [#allocation3], 1
    %443 = vsyncpa %s442, 1

</llo_original>
